<compile_context>
chip_gen: v5e
topology: v5e:2x2
jax: 0.10.0
libtpu: 0.0.40
codegen_flags: <defaults>
</compile_context>

<pallas_src>
import jax
import jax.numpy as jnp
from jax import lax
from jax.experimental import pallas as pl
from jax.experimental.pallas import tpu as pltpu


def _round_up(x, m):
    return ((x + m - 1) // m) * m


# ---------------------------------------------------------------------------
# Kernel 1: weight normalization   w[:, o] = g[o] * v[:, o] / ||v[:, o]||_2
# ---------------------------------------------------------------------------
def _weight_norm_kernel(v_ref, g_ref, w_ref):
    v = v_ref[...]                                           # (K_pad, 128) f32
    sumsq = jnp.sum(v * v, axis=0, keepdims=True)            # (1, 128)
    # rsqrt goes to the EUP slot; where-guard keeps padded (all-zero) columns at 0
    # instead of inf/NaN.
    scale = jnp.where(sumsq > 0.0, g_ref[...] * lax.rsqrt(sumsq), 0.0)
    w_ref[...] = (v * scale).astype(w_ref.dtype)             # bf16 normalized weight


# ---------------------------------------------------------------------------
# Kernel 2: tiled matmul + bias    out = patches @ w_norm + b   (f32 accumulate)
# ---------------------------------------------------------------------------
def _matmul_bias_kernel(p_ref, w_ref, b_ref, o_ref, acc_ref):
    k = pl.program_id(2)

    @pl.when(k == 0)
    def _():
        acc_ref[...] = jnp.zeros_like(acc_ref)

    acc_ref[...] += jnp.dot(p_ref[...], w_ref[...],
                            preferred_element_type=jnp.float32)   # MXU, bf16 in / f32 acc

    @pl.when(k == pl.num_programs(2) - 1)
    def _():
        o_ref[...] = (acc_ref[...] + b_ref[...]).astype(o_ref.dtype)


def weight_norm_conv2d(x_nchw, v, g, b, *, stride=1, padding=0):
    """x_nchw: (N, C, H, W); v: (O, C, KH, KW); g: (O,); b: (O,). Returns (N, O, Hout, Wout)."""
    N, C, H, W = x_nchw.shape
    O, _, KH, KW = v.shape

    H_out = (H + 2 * padding - KH) // stride + 1
    W_out = (W + 2 * padding - KW) // stride + 1
    M = N * H_out * W_out
    K = KH * KW * C

    # ----- glue: NCHW -> NHWC (bf16), spatial pad, im2col in (kh, kw, c) order -----
    # bf16 *before* im2col halves the duplicated HBM bytes of the patches buffer.
    x_nhwc = jnp.transpose(x_nchw, (0, 2, 3, 1)).astype(jnp.bfloat16)
    x_sp = jnp.pad(x_nhwc, ((0, 0), (padding, padding), (padding, padding), (0, 0)))
    # TODO(synk): fold im2col into the matmul kernel (read x from HBM once and replay the
    # KH*KW shifts from VMEM) to cut HBM read traffic ~KH*KW x for large shapes.
    cols = []
    for kh in range(KH):
        for kw in range(KW):
            cols.append(x_sp[:, kh:kh + stride * H_out:stride,
                                kw:kw + stride * W_out:stride, :])
    # (N, Hout, Wout, KH*KW, C) -> contiguous reshape; NO full-size transpose materialized.
    patches = jnp.stack(cols, axis=3).reshape(M, K)

    # Reorder the *tiny* weight instead: row index = (kh*KW + kw)*C + c  matches patches.
    v_mat = jnp.transpose(v, (2, 3, 1, 0)).reshape(K, O).astype(jnp.float32)     # (K, O)

    # ----- pad to lane / tile multiples -----
    O_pad0 = _round_up(O, 128)
    tn = min(256, O_pad0)
    O_pad = _round_up(O_pad0, tn)

    K_pad0 = _round_up(K, 128)
    tk = min(512, K_pad0)
    K_pad = _round_up(K_pad0, tk)

    tm = min(1024, _round_up(M, 16))
    M_pad = _round_up(M, tm)

    patches = jnp.pad(patches, ((0, M_pad - M), (0, K_pad - K)))
    v_mat = jnp.pad(v_mat, ((0, K_pad - K), (0, O_pad - O)))
    g_row = jnp.pad(g.astype(jnp.float32).reshape(1, O), ((0, 0), (0, O_pad - O)))
    b_row = jnp.pad(b.astype(jnp.float32).reshape(1, O), ((0, 0), (0, O_pad - O)))

    # ----- Kernel 1: normalize the weight once (bf16 out), tiled over O lanes -----
    w_norm = pl.pallas_call(
        _weight_norm_kernel,
        out_shape=jax.ShapeDtypeStruct((K_pad, O_pad), jnp.bfloat16),
        grid_spec=pltpu.PrefetchScalarGridSpec(
            num_scalar_prefetch=0,
            grid=(O_pad // 128,),
            in_specs=[
                pl.BlockSpec((K_pad, 128), lambda j: (0, j)),
                pl.BlockSpec((1, 128), lambda j: (0, j)),
            ],
            out_specs=pl.BlockSpec((K_pad, 128), lambda j: (0, j)),
        ),
        compiler_params=pltpu.CompilerParams(
            dimension_semantics=("parallel",)),
    )(v_mat, g_row)

    # ----- Kernel 2: tiled (M, O, K) matmul + bias with f32 VMEM accumulator -----
    grid = (M_pad // tm, O_pad // tn, K_pad // tk)
    out_flat = pl.pallas_call(
        _matmul_bias_kernel,
        out_shape=jax.ShapeDtypeStruct((M_pad, O_pad), jnp.float32),
        grid_spec=pltpu.PrefetchScalarGridSpec(
            num_scalar_prefetch=0,
            grid=grid,
            in_specs=[
                pl.BlockSpec((tm, tk), lambda i, j, k: (i, k)),   # patches tile (bf16)
                pl.BlockSpec((tk, tn), lambda i, j, k: (k, j)),   # normalized weight tile (bf16)
                pl.BlockSpec((1, tn), lambda i, j, k: (0, j)),    # bias tile (f32)
            ],
            out_specs=pl.BlockSpec((tm, tn), lambda i, j, k: (i, j)),
            scratch_shapes=[pltpu.VMEM((tm, tn), jnp.float32)],
        ),
        compiler_params=pltpu.CompilerParams(
            dimension_semantics=("parallel", "parallel", "arbitrary"),
            vmem_limit_bytes=32 * 1024 * 1024),
    )(patches, w_norm, b_row)

    # ----- glue: strip padding, back to NCHW -----
    out = out_flat[:M, :O].reshape(N, H_out, W_out, O)
    return jnp.transpose(out, (0, 3, 1, 2))


def _reference(x_nchw, v, g, b, *, stride=1, padding=0):
    """Reference matching the kernel's numerics: f32 weight-norm, bf16 MXU operands,
    f32 accumulation, f32 bias add."""
    vf = v.astype(jnp.float32)
    norm = jnp.sqrt(jnp.sum(vf * vf, axis=(1, 2, 3), keepdims=True))
    w = vf * (g.astype(jnp.float32).reshape(-1, 1, 1, 1) / norm)
    y = lax.conv_general_dilated(
        x_nchw.astype(jnp.bfloat16), w.astype(jnp.bfloat16),
        window_strides=(stride, stride),
        padding=[(padding, padding), (padding, padding)],
        dimension_numbers=("NCHW", "OIHW", "NCHW"),
        preferred_element_type=jnp.float32)
    return y + b.astype(jnp.float32).reshape(1, -1, 1, 1)


if __name__ == "__main__":
    key = jax.random.PRNGKey(0)
    k1, k2, k3, k4 = jax.random.split(key, 4)

    N, C, H, W = 2, 4, 16, 16
    O, KH, KW = 8, 3, 3
    stride, padding = 1, 1

    x = jax.random.normal(k1, (N, C, H, W), dtype=jnp.float32)
    v = jax.random.normal(k2, (O, C, KH, KW), dtype=jnp.float32) * 0.1
    g = jax.random.normal(k3, (O,), dtype=jnp.float32) + 1.0
    b = jax.random.normal(k4, (O,), dtype=jnp.float32) * 0.1

    y = weight_norm_conv2d(x, v, g, b, stride=stride, padding=padding)
    y = jax.block_until_ready(y)

    y_ref = _reference(x, v, g, b, stride=stride, padding=padding)
    assert y.shape == (N, O, H, W)
    max_err = jnp.max(jnp.abs(y - y_ref))
    assert jnp.allclose(y, y_ref, atol=1e-2, rtol=1e-2), f"max err {max_err}"

    print("KERNEL_OK")
</pallas_src>

<mosaic_0001>
module attributes {stable_mosaic.version = 11 : i64} {
  func.func @_weight_norm_kernel(%arg0: i32, %arg1: memref<128x128xf32, #tpu.memory_space<vmem>>, %arg2: memref<1x128xf32, #tpu.memory_space<vmem>>, %arg3: memref<128x128xbf16, #tpu.memory_space<vmem>>) attributes {dimension_semantics = [#tpu.dimension_semantics<parallel>], iteration_bounds = array<i64: 1>, scalar_prefetch = 0 : i64, scratch_operands = 0 : i64, tpu.core_type = #tpu.core_type<tc>, window_params = [{transform_indices = @transform_0, window_bounds = array<i64: 128, 128>}, {transform_indices = @transform_1, window_bounds = array<i64: 1, 128>}, {transform_indices = @transform_2, window_bounds = array<i64: 128, 128>}]} {
    %c0 = arith.constant 0 : index
    %c0_0 = arith.constant 0 : index
    %0 = vector.load %arg1[%c0, %c0_0] : memref<128x128xf32, #tpu.memory_space<vmem>>, vector<128x128xf32>
    %1 = arith.mulf %0, %0 : vector<128x128xf32>
    %cst = arith.constant dense<0.000000e+00> : vector<128xf32>
    %2 = vector.multi_reduction <add>, %1, %cst [0] : vector<128x128xf32> to vector<128xf32>
    %3 = vector.shape_cast %2 : vector<128xf32> to vector<1x128xf32>
    %cst_1 = arith.constant 0.000000e+00 : f32
    %4 = vector.broadcast %cst_1 : f32 to vector<1x128xf32>
    %5 = arith.cmpf ogt, %3, %4 : vector<1x128xf32>
    %c0_2 = arith.constant 0 : index
    %c0_3 = arith.constant 0 : index
    %6 = vector.load %arg2[%c0_2, %c0_3] : memref<1x128xf32, #tpu.memory_space<vmem>>, vector<1x128xf32>
    %7 = math.rsqrt %3 : vector<1x128xf32>
    %8 = arith.mulf %6, %7 : vector<1x128xf32>
    %cst_4 = arith.constant 0.000000e+00 : f32
    %9 = vector.broadcast %cst_4 : f32 to vector<1x128xf32>
    %10 = arith.select %5, %8, %9 : vector<1x128xi1>, vector<1x128xf32>
    %11 = vector.broadcast %10 : vector<1x128xf32> to vector<128x128xf32>
    %12 = arith.mulf %0, %11 : vector<128x128xf32>
    %13 = arith.truncf %12 : vector<128x128xf32> to vector<128x128xbf16>
    %c0_5 = arith.constant 0 : index
    %c0_6 = arith.constant 0 : index
    %14 = vector.load %arg3[%c0_5, %c0_6] : memref<128x128xbf16, #tpu.memory_space<vmem>>, vector<128x128xbf16>
    tpu.vector_store %arg3[%c0_5, %c0_6], %13 {strides = array<i32>} : memref<128x128xbf16, #tpu.memory_space<vmem>>, vector<128x128xbf16>,
    return
  }
  func.func @transform_0(%arg0: i32) -> (i32, i32) {
    %c0_i32 = arith.constant 0 : i32
    %c0_i32_0 = arith.constant 0 : i32
    return %c0_i32, %arg0 : i32, i32
  }
  func.func @transform_1(%arg0: i32) -> (i32, i32) {
    %c0_i32 = arith.constant 0 : i32
    %c0_i32_0 = arith.constant 0 : i32
    return %c0_i32, %arg0 : i32, i32
  }
  func.func @transform_2(%arg0: i32) -> (i32, i32) {
    %c0_i32 = arith.constant 0 : i32
    %c0_i32_0 = arith.constant 0 : i32
    return %c0_i32, %arg0 : i32, i32
  }
}

</mosaic_0001>

<llo_original>
// kernel: tpu_custom_call.1
$region0: #{tpu_custom_call.1}
  #allocation0 [shape = 'u32[]', space=smem, size = 0x4, offset = 0x4, fixed_abs, tag = 'smem constant byte address 0x4 - core index']
  #allocation1 [shape = 'u32[72,128]{1,0:T(1,128)}', space=vmem, size = 0x9000, scoped, tag = 'internal scratch']
  %s0 = inlined_call_operand.hbm [shape: f32[128,128], index: 0, kind: input, shape index: {}]
  %s1 = inlined_call_operand.hbm [shape: f32[1,128], index: 1, kind: input, shape index: {}]
  %s2 = inlined_call_operand.hbm [shape: bf16[128,128], index: 2, kind: output, shape index: {}]
  %s3 = sld [smem:[#allocation0]]
  $region26: #{tpu_custom_call.1} parent=0
    _
  %s5 = ssub.s32 1, %s3
  %s6 = scalar_select 0, %s5, %s3
  $region1: #{tpu_custom_call.1} parent=0
    #allocation2 [shape = 'u8[65536]{0}', space=vmem, size = 0x10000, scoped, tag = 'input window, operand 0, single buffered']
    #allocation3 [shape = 's32[1]{0}', space=sflag, size = 0x4, scoped, tag = 'scoped memory for tpu_custom_call.1']
    #allocation4 [shape = 's32[1]{0}', space=sflag, size = 0x4, scoped, tag = 'scoped memory for tpu_custom_call.1']
    #allocation5 [shape = 'u8[512]{0}', space=vmem, size = 0x400, scoped, tag = 'input window, operand 1, single buffered']
    #allocation6 [shape = 's32[1]{0}', space=sflag, size = 0x4, scoped, tag = 'scoped memory for tpu_custom_call.1']
    #allocation7 [shape = 'u8[32768]{0}', space=vmem, size = 0x8000, scoped, tag = 'output window, operand 0, single buffered']
    %7 = vsyncpa [#allocation3], 0
    %8 = vsyncpa [#allocation6], 0
    %9 = vsyncpa [#allocation4], 0
    // Predicated region
    $region2: #{tpu_custom_call.1} parent=1 // pred_check
      _
    $region3: #{tpu_custom_call.1} parent=1 // pred_check_branch
      %11 = sbr.rel (0) target = $region5
    $region4: #{tpu_custom_call.1} parent=1 // pred_region
      %13 = vsyncadd [#allocation3], 0
      %s14 = sshll.u32 %s0, 4
      %s15 = int_to_ptr.hbm [resolvable:$true] %s14
      %s16 = sshll.u32 [#allocation2], 4
      %s17 = int_to_ptr.vmem [resolvable:$true] %s16
      %22 = dma.hbm_to_vmem [thread:$0]  %s15, 2048, %s17, [#allocation3], 128, 128, 8
    $region5: #{tpu_custom_call.1} parent=1 // pred_fallthru
      _
    // Predicated region
    $region6: #{tpu_custom_call.1} parent=1 // pred_check
      _
    $region7: #{tpu_custom_call.1} parent=1 // pred_check_branch
      %24 = sbr.rel (0) target = $region9
    $region8: #{tpu_custom_call.1} parent=1 // pred_region
      %26 = vsyncadd [#allocation6], 0
      %s28 = sshll.u32 %s1, 4
      %s29 = int_to_ptr.hbm [resolvable:$true] %s28
      %s30 = sshll.u32 [#allocation5], 4
      %s31 = int_to_ptr.vmem [resolvable:$true] %s30
      %33 = dma.hbm_to_vmem [thread:$0]  %s29, 16, %s31, [#allocation6]
    $region9: #{tpu_custom_call.1} parent=1 // pred_fallthru
      _
    // Predicated region
    $region10: #{tpu_custom_call.1} parent=1 // pred_check
      _
    $region11: #{tpu_custom_call.1} parent=1 // pred_check_branch
      %35 = sbr.rel (0) target = $region13
    $region12: #{tpu_custom_call.1} parent=1 // pred_region
      %37 = dma.done [#allocation3], 2048
    $region13: #{tpu_custom_call.1} parent=1 // pred_fallthru
      _
    // Predicated region
    $region14: #{tpu_custom_call.1} parent=1 // pred_check
      _
    $region15: #{tpu_custom_call.1} parent=1 // pred_check_branch
      %39 = sbr.rel (0) target = $region17
    $region16: #{tpu_custom_call.1} parent=1 // pred_region
      %41 = dma.done [#allocation6], 16
    $region17: #{tpu_custom_call.1} parent=1 // pred_fallthru
      _
    %v42 = vld [vmem:[#allocation2] sm:$0xff]
    %v43 = vld [vmem:[#allocation2 + $0x8] sm:$0xff]
    %v44 = vld [vmem:[#allocation2 + $0x10] sm:$0xff]
    %v45 = vld [vmem:[#allocation2 + $0x18] sm:$0xff]
    %v46 = vld [vmem:[#allocation2 + $0x20] sm:$0xff]
    %v47 = vld [vmem:[#allocation2 + $0x28] sm:$0xff]
    %v48 = vld [vmem:[#allocation2 + $0x30] sm:$0xff]
    %v49 = vld [vmem:[#allocation2 + $0x38] sm:$0xff]
    %v50 = vld [vmem:[#allocation2 + $0x40] sm:$0xff]
    %v51 = vld [vmem:[#allocation2 + $0x48] sm:$0xff]
    %v52 = vld [vmem:[#allocation2 + $0x50] sm:$0xff]
    %v53 = vld [vmem:[#allocation2 + $0x58] sm:$0xff]
    %v54 = vld [vmem:[#allocation2 + $0x60] sm:$0xff]
    %v55 = vld [vmem:[#allocation2 + $0x68] sm:$0xff]
    %v56 = vld [vmem:[#allocation2 + $0x70] sm:$0xff]
    %v57 = vld [vmem:[#allocation2 + $0x78] sm:$0xff]
    %v58 = vmul.f32 %v42, %v42
    %v59 = vmul.f32 %v43, %v43
    %v60 = vmul.f32 %v44, %v44
    %v61 = vmul.f32 %v45, %v45
    %v62 = vmul.f32 %v46, %v46
    %v63 = vmul.f32 %v47, %v47
    %v64 = vmul.f32 %v48, %v48
    %v65 = vmul.f32 %v49, %v49
    %v66 = vmul.f32 %v50, %v50
    %v67 = vmul.f32 %v51, %v51
    %v68 = vmul.f32 %v52, %v52
    %v69 = vmul.f32 %v53, %v53
    %v70 = vmul.f32 %v54, %v54
    %v71 = vmul.f32 %v55, %v55
    %v72 = vmul.f32 %v56, %v56
    %v73 = vmul.f32 %v57, %v57
    %v74 = vadd.f32 %v58, %v59
    %v75 = vadd.f32 %v74, %v60
    %v76 = vadd.f32 %v75, %v61
    %v77 = vadd.f32 %v76, %v62
    %v78 = vadd.f32 %v77, %v63
    %v79 = vadd.f32 %v78, %v64
    %v80 = vadd.f32 %v79, %v65
    %v81 = vadd.f32 %v80, %v66
    %v82 = vadd.f32 %v81, %v67
    %v83 = vadd.f32 %v82, %v68
    %v84 = vadd.f32 %v83, %v69
    %v85 = vadd.f32 %v84, %v70
    %v86 = vadd.f32 %v85, %v71
    %v87 = vadd.f32 %v86, %v72
    %v88 = vadd.f32 %v87, %v73
    %v89 = vrot.slane %v88, 4
    %v90 = vadd.f32 %v88, %v89
    %v91 = vrot.slane %v90, 2
    %v92 = vadd.f32 %v90, %v91
    %v93 = vrot.slane %v92, 1
    %v94 = vadd.f32 %v92, %v93
    %vm95 = vcmp.gt.f32.partialorder %v94, 0.0
    %v96 = vld [vmem:[#allocation5] sm:$0x1]
    %v97 = vrsqrt.pop %v94
    %v98 = vmul.f32 %v97, %v94
    %v99 = vmul.f32 %v98, %v97
    %v100 = vmul.f32 0.5, %v99
    %v101 = vsub.f32 1.5, %v100
    %v102 = vmul.f32 %v97, %v101
    %vm103 = vweird.f32 %v94
    %vm104 = vweird.f32 %v97
    %vm105 = vmor %vm103, %vm104
    %v106 = vsel %vm105, %v97, %v102
    %v107 = vmul.f32 %v96, %v106
    %v108 = vsel %vm95, %v107, 0.0
    %v109 = vperm.slane %v108, 0
    %v110 = vmul.f32 %v42, %v109
    %v111 = vmul.f32 %v43, %v109
    %v112 = vmul.f32 %v44, %v109
    %v113 = vmul.f32 %v45, %v109
    %v114 = vmul.f32 %v46, %v109
    %v115 = vmul.f32 %v47, %v109
    %v116 = vmul.f32 %v48, %v109
    %v117 = vmul.f32 %v49, %v109
    %v118 = vmul.f32 %v50, %v109
    %v119 = vmul.f32 %v51, %v109
    %v120 = vmul.f32 %v52, %v109
    %v121 = vmul.f32 %v53, %v109
    %v122 = vmul.f32 %v54, %v109
    %v123 = vmul.f32 %v55, %v109
    %v124 = vmul.f32 %v56, %v109
    %v125 = vmul.f32 %v57, %v109
    %v126 = vpack.c.bf16 %v110, %v110
    %v127 = vpack.c.bf16 %v111, %v111
    %v128 = vpack.c.bf16 %v112, %v112
    %v129 = vpack.c.bf16 %v113, %v113
    %v130 = vpack.c.bf16 %v114, %v114
    %v131 = vpack.c.bf16 %v115, %v115
    %v132 = vpack.c.bf16 %v116, %v116
    %v133 = vpack.c.bf16 %v117, %v117
    %v134 = vpack.c.bf16 %v118, %v118
    %v135 = vpack.c.bf16 %v119, %v119
    %v136 = vpack.c.bf16 %v120, %v120
    %v137 = vpack.c.bf16 %v121, %v121
    %v138 = vpack.c.bf16 %v122, %v122
    %v139 = vpack.c.bf16 %v123, %v123
    %v140 = vpack.c.bf16 %v124, %v124
    %v141 = vpack.c.bf16 %v125, %v125
    %142 = vst [vmem:[#allocation7] sm:$0xf] %v126
    %143 = vst [vmem:[#allocation7 + $0x4] sm:$0xf] %v127
    %144 = vst [vmem:[#allocation7 + $0x8] sm:$0xf] %v128
    %145 = vst [vmem:[#allocation7 + $0xc] sm:$0xf] %v129
    %146 = vst [vmem:[#allocation7 + $0x10] sm:$0xf] %v130
    %147 = vst [vmem:[#allocation7 + $0x14] sm:$0xf] %v131
    %148 = vst [vmem:[#allocation7 + $0x18] sm:$0xf] %v132
    %149 = vst [vmem:[#allocation7 + $0x1c] sm:$0xf] %v133
    %150 = vst [vmem:[#allocation7 + $0x20] sm:$0xf] %v134
    %151 = vst [vmem:[#allocation7 + $0x24] sm:$0xf] %v135
    %152 = vst [vmem:[#allocation7 + $0x28] sm:$0xf] %v136
    %153 = vst [vmem:[#allocation7 + $0x2c] sm:$0xf] %v137
    %154 = vst [vmem:[#allocation7 + $0x30] sm:$0xf] %v138
    %155 = vst [vmem:[#allocation7 + $0x34] sm:$0xf] %v139
    %156 = vst [vmem:[#allocation7 + $0x38] sm:$0xf] %v140
    %157 = vst [vmem:[#allocation7 + $0x3c] sm:$0xf] %v141
    // Predicated region
    $region18: #{tpu_custom_call.1} parent=1 // pred_check
      _
    $region19: #{tpu_custom_call.1} parent=1 // pred_check_branch
      %159 = sbr.rel (0) target = $region21
    $region20: #{tpu_custom_call.1} parent=1 // pred_region
      %161 = vsyncadd [#allocation4], 0
      %s162 = sshll.u32 [#allocation7], 4
      %s163 = int_to_ptr.vmem [resolvable:$true] %s162
      %s164 = sshll.u32 %s2, 4
      %s165 = int_to_ptr.hbm [resolvable:$true] %s164
      %170 = dma.vmem_to_hbm [thread:$0]  %s163, 1024, %s165, [#allocation4], 64, 64, 4
    $region21: #{tpu_custom_call.1} parent=1 // pred_fallthru
      _
    // Predicated region
    $region22: #{tpu_custom_call.1} parent=1 // pred_check
      _
    $region23: #{tpu_custom_call.1} parent=1 // pred_check_branch
      %172 = sbr.rel (0) target = $region25
    $region24: #{tpu_custom_call.1} parent=1 // pred_region
      %174 = dma.done [#allocation4], 1024
    $region25: #{tpu_custom_call.1} parent=1 // pred_fallthru
      _
    %175 = vsyncpa [#allocation3], 1
    %176 = vsyncpa [#allocation6], 1
    %177 = vsyncpa [#allocation4], 1

</llo_original>
